<compile_context>
chip_gen: v7x
topology: tpu7x:2x2x1
jax: 0.10.0
libtpu: 0.0.40
codegen_flags: <defaults>
</compile_context>

<pallas_src>
import math

import jax
import jax.numpy as jnp
from jax.experimental import pallas as pl
from jax.experimental.pallas import tpu as pltpu


def _lifting_kernel(w_ref, b_ref, x_ref, o_ref):
    # w_ref: (C_out, C_in)   b_ref: (C_out, 1)  f32
    # x_ref: (C_in, T_hw)    o_ref: (C_out, T_hw)   -- lane dim = spatial tile
    acc = jnp.dot(w_ref[...], x_ref[...], preferred_element_type=jnp.float32)
    o_ref[...] = (acc + b_ref[...]).astype(o_ref.dtype)


def _cdiv(a, b):
    return -(-a // b)


def _physical_vmem_bytes():
    """Best-effort per-core VMEM capacity; conservative fallback (v7x = 64 MiB)."""
    try:
        info = pltpu.get_tpu_info()
        for attr in ("vmem_capacity_bytes", "vmem_bytes", "vmem_size_bytes"):
            v = getattr(info, attr, None)
            if v:
                return int(v)
    except Exception:
        pass
    return 64 << 20


def _pick_hw_tile(hw, c_in, c_out, in_bytes, out_bytes, batch,
                  vmem_budget_bytes, max_tile=32768):
    """Largest lane tile (multiple of 128) whose double-buffered in+out blocks
    (plus an f32 accumulator temp) fit the VMEM budget, with enough grid steps
    to feed both TensorCores and the pipeline."""
    bytes_per_col = (2 * (c_in * in_bytes + c_out * out_bytes)  # dbl-buffered blocks
                     + c_out * 4)                               # f32 accumulator temp
    cap = vmem_budget_bytes // max(1, bytes_per_col)
    cap = min(max_tile, cap)
    cap = max(128, (cap // 128) * 128)

    if hw <= cap:
        tile = hw  # full spatial extent in one block (always legal)
    else:
        # Prefer an evenly-dividing tile, but only if it keeps >= 75% of the cap;
        # otherwise take the cap and let Pallas mask the single trailing block.
        tile = cap
        floor = max(128, (int(0.75 * cap) // 128) * 128)
        t = cap
        while t >= floor:
            if hw % t == 0:
                tile = t
                break
            t -= 128

    # Megacore / pipeline priming: aim for >= ~8 total grid steps when the
    # spatial extent is big enough to split without hurting per-step bytes.
    min_split = 1024
    if batch * _cdiv(hw, tile) < 8 and hw >= 2 * min_split:
        target_nt = _cdiv(8, max(1, batch))
        want = max(min_split, (_cdiv(hw, target_nt) // 128) * 128)
        tile = max(128, min(tile, want))
    return tile


def lifting_forward(x, weight, bias):
    """x: (B, C_in, *spatial); weight: (C_out, C_in); bias: (C_out,).
    Returns y with y.dtype == x.dtype (f32 accumulation in-kernel)."""
    B, C_in = x.shape[0], x.shape[1]
    spatial = x.shape[2:]
    HW = 1
    for s in spatial:
        HW *= s
    C_out = weight.shape[0]

    # Native-dtype I/O: only upcast if x is not a floating type.
    if jnp.issubdtype(x.dtype, jnp.floating):
        compute_dtype = x.dtype
    else:
        compute_dtype = jnp.float32
    out_dtype = compute_dtype

    # Channel-major view; contiguous reshape, no transposes.
    x_flat = x.reshape(B, C_in, HW).astype(compute_dtype)
    w = weight.astype(compute_dtype)                      # (C_out, C_in) - tiny
    b2d = bias.reshape(C_out, 1).astype(jnp.float32)      # f32 bias added post-matmul

    in_bytes = jnp.dtype(compute_dtype).itemsize
    out_bytes = jnp.dtype(out_dtype).itemsize

    physical_vmem = _physical_vmem_bytes()
    # Use roughly a third of physical VMEM for our pipelined blocks (safe on
    # v7x's 64 MiB; generous on v5e/v6e's 128 MiB), capped at 32 MiB.
    vmem_budget = max(8 << 20, min(physical_vmem // 3, 32 << 20))

    t_hw = _pick_hw_tile(HW, C_in, C_out, in_bytes, out_bytes, B, vmem_budget)
    n_t = _cdiv(HW, t_hw)

    # Raise the scoped VMEM limit to cover the blocks (v5e default is only 16 MiB).
    est_vmem = (2 * t_hw * (C_in * in_bytes + C_out * out_bytes)
                + t_hw * C_out * 4
                + 2 * (C_out * C_in * in_bytes + C_out * 4)
                + (2 << 20))
    vmem_limit = int(min(int(physical_vmem * 0.85), max(32 << 20, est_vmem)))

    cost = pl.CostEstimate(
        flops=2 * B * HW * C_in * C_out,
        transcendentals=0,
        bytes_accessed=(B * HW * (C_in * in_bytes + C_out * out_bytes)
                        + C_out * C_in * in_bytes + C_out * 4),
    )

    out = pl.pallas_call(
        _lifting_kernel,
        out_shape=jax.ShapeDtypeStruct((B, C_out, HW), out_dtype),
        grid_spec=pltpu.PrefetchScalarGridSpec(
            num_scalar_prefetch=0,
            grid=(B, n_t),
            in_specs=[
                pl.BlockSpec((C_out, C_in), lambda b, t: (0, 0)),   # weights resident
                pl.BlockSpec((C_out, 1), lambda b, t: (0, 0)),      # bias resident
                pl.BlockSpec((None, C_in, t_hw), lambda b, t: (b, 0, t)),
            ],
            out_specs=pl.BlockSpec((None, C_out, t_hw), lambda b, t: (b, 0, t)),
        ),
        compiler_params=pltpu.CompilerParams(
            dimension_semantics=("parallel", "parallel"),
            vmem_limit_bytes=vmem_limit,
        ),
        cost_estimate=cost,
    )(w, b2d, x_flat)

    return out.reshape((B, C_out) + spatial)


def init_lifting_params(key, in_channels, out_channels):
    """Matches nn.ConvNd(in, out, 1) default init: kaiming_uniform_(a=sqrt(5))
    gives weight bound = 1/sqrt(fan_in); bias bound = 1/sqrt(fan_in)."""
    k_w, k_b = jax.random.split(key)
    fan_in = in_channels  # kernel_size = 1
    bound = 1.0 / math.sqrt(fan_in)
    weight = jax.random.uniform(k_w, (out_channels, in_channels), jnp.float32,
                                minval=-bound, maxval=bound)
    bias = jax.random.uniform(k_b, (out_channels,), jnp.float32,
                              minval=-bound, maxval=bound)
    return weight, bias


if __name__ == "__main__":
    key = jax.random.PRNGKey(0)
    k_x, k_p = jax.random.split(key)

    B, C_in, H, W = 2, 4, 16, 16
    C_out = 32

    x = jax.random.normal(k_x, (B, C_in, H, W), jnp.float32)
    weight, bias = init_lifting_params(k_p, C_in, C_out)

    y = lifting_forward(x, weight, bias)
    y = jax.block_until_ready(y)

    # Reference: 1x1 conv == per-pixel linear map.
    y_ref = jnp.einsum("bchw,oc->bohw", x, weight) + bias[None, :, None, None]
    assert y.shape == (B, C_out, H, W)
    assert y.dtype == x.dtype
    assert jnp.allclose(y, y_ref, atol=1e-5, rtol=1e-5)

    print("KERNEL_OK")
</pallas_src>

<mosaic_0001>
module attributes {stable_mosaic.version = 11 : i64} {
  func.func @_lifting_kernel(%arg0: i32, %arg1: i32, %arg2: memref<32x4xf32, #tpu.memory_space<vmem>>, %arg3: memref<32x1xf32, #tpu.memory_space<vmem>>, %arg4: memref<1x4x256xf32, #tpu.memory_space<vmem>>, %arg5: memref<1x32x256xf32, #tpu.memory_space<vmem>>) attributes {dimension_semantics = [#tpu.dimension_semantics<parallel>, #tpu.dimension_semantics<parallel>], iteration_bounds = array<i64: 2, 1>, scalar_prefetch = 0 : i64, scratch_operands = 0 : i64, tpu.core_type = #tpu.core_type<tc>, window_params = [{pipeline_mode = #tpu.pipeline_mode<synchronous>, transform_indices = @transform_0, window_bounds = array<i64: 32, 4>}, {pipeline_mode = #tpu.pipeline_mode<synchronous>, transform_indices = @transform_1, window_bounds = array<i64: 32, 1>}, {transform_indices = @transform_2, window_bounds = array<i64: 1, 4, 256>}, {transform_indices = @transform_3, window_bounds = array<i64: 1, 32, 256>}]} {
    %c0 = arith.constant 0 : index
    %c0_0 = arith.constant 0 : index
    %0 = vector.load %arg2[%c0, %c0_0] : memref<32x4xf32, #tpu.memory_space<vmem>>, vector<32x4xf32>
    %c0_1 = arith.constant 0 : index
    %c0_2 = arith.constant 0 : index
    %c0_3 = arith.constant 0 : index
    %1 = vector.load %arg4[%c0_1, %c0_2, %c0_3] : memref<1x4x256xf32, #tpu.memory_space<vmem>>, vector<1x4x256xf32>
    %2 = vector.shape_cast %1 : vector<1x4x256xf32> to vector<4x256xf32>
    %cst = arith.constant dense<0.000000e+00> : vector<32x256xf32>
    %3 = tpu.matmul %0, %2, %cst {dimension_numbers = #tpu.dot_dimension_numbers<[1], [0], [0], [1], [0, 0, 1, 1], [], []>} : vector<32x4xf32>, vector<4x256xf32>, vector<32x256xf32> -> vector<32x256xf32>
    %c0_4 = arith.constant 0 : index
    %c0_5 = arith.constant 0 : index
    %4 = vector.load %arg3[%c0_4, %c0_5] : memref<32x1xf32, #tpu.memory_space<vmem>>, vector<32x1xf32>
    %5 = vector.broadcast %4 : vector<32x1xf32> to vector<32x256xf32>
    %6 = arith.addf %3, %5 : vector<32x256xf32>
    %c0_6 = arith.constant 0 : index
    %c0_7 = arith.constant 0 : index
    %c0_8 = arith.constant 0 : index
    %7 = vector.load %arg5[%c0_6, %c0_7, %c0_8] : memref<1x32x256xf32, #tpu.memory_space<vmem>>, vector<1x32x256xf32>
    %8 = vector.shape_cast %7 : vector<1x32x256xf32> to vector<32x256xf32>
    %9 = vector.shape_cast %6 : vector<32x256xf32> to vector<1x32x256xf32>
    tpu.vector_store %arg5[%c0_6, %c0_7, %c0_8], %9 {strides = array<i32>} : memref<1x32x256xf32, #tpu.memory_space<vmem>>, vector<1x32x256xf32>,
    return
  }
  func.func @transform_0(%arg0: i32, %arg1: i32) -> (i32, i32) {
    %c0_i32 = arith.constant 0 : i32
    %c0_i32_0 = arith.constant 0 : i32
    %c0_i32_1 = arith.constant 0 : i32
    return %c0_i32, %c0_i32_0 : i32, i32
  }
  func.func @transform_1(%arg0: i32, %arg1: i32) -> (i32, i32) {
    %c0_i32 = arith.constant 0 : i32
    %c0_i32_0 = arith.constant 0 : i32
    %c0_i32_1 = arith.constant 0 : i32
    return %c0_i32, %c0_i32_0 : i32, i32
  }
  func.func @transform_2(%arg0: i32, %arg1: i32) -> (i32, i32, i32) {
    %c0_i32 = arith.constant 0 : i32
    %c0_i32_0 = arith.constant 0 : i32
    return %arg0, %c0_i32, %arg1 : i32, i32, i32
  }
  func.func @transform_3(%arg0: i32, %arg1: i32) -> (i32, i32, i32) {
    %c0_i32 = arith.constant 0 : i32
    %c0_i32_0 = arith.constant 0 : i32
    return %arg0, %c0_i32, %arg1 : i32, i32, i32
  }
}

</mosaic_0001>

<llo_original>
// kernel: tpu_custom_call.1
$region0: #{tpu_custom_call.1}
  #allocation0 [shape = 'u32[]', space=smem, size = 0x4, offset = 0x4, fixed_abs, tag = 'smem constant byte address 0x4 - core index']
  #allocation1 [shape = 'u32[144,128]{1,0:T(1,128)}', space=vmem, size = 0x12000, scoped, tag = 'internal scratch']
  %s0 = inlined_call_operand.vmem [shape: f32[32,4], index: 0, kind: input, shape index: {}]
  %s1 = inlined_call_operand.vmem [shape: f32[32,1], index: 1, kind: input, shape index: {}]
  %s2 = inlined_call_operand.vmem [shape: f32[2,4,256], index: 2, kind: input, shape index: {}]
  %s3 = inlined_call_operand.hbm [shape: f32[2,32,256], index: 3, kind: output, shape index: {}]
  %s4 = sld [smem:[#allocation0]]
  $region45: #{tpu_custom_call.1} parent=0
    _
  %s6 = ssub.s32 1, %s4
  %s7 = scalar_select 0, %s6, %s4
  $region1: #{tpu_custom_call.1} parent=0
    #allocation2 [shape = 'u8[65536]{0}', space=vmem, size = 0x10000, scoped, tag = 'output window, operand 0']
    #allocation3 [shape = 's32[2]{0}', space=sflag, size = 0x8, scoped, tag = 'scoped memory for tpu_custom_call.1']
    %8 = vsyncpa [#allocation3], 0
    %s9 = scalar_lea.sflag [#allocation3], 1
    %10 = vsyncpa %s9, 0
    loop: start=0, step=1, limit=4
    $region2: #{tpu_custom_call.1} parent=1 // loop_pre_header
      _
    $region3: #{tpu_custom_call.1} parent=1 // loop_header
      %s12 = sphi 0, %s16
      %p13 = scmp.ge.s32.totalorder %s12, 4
      %s19 = sphi 0, %s31
      %s20 = sphi 0, %s27
      %s21 = sphi 0, %s19
      %s22 = sphi 0, %s20
      %s23 = sphi 0, %s21
      %s24 = sphi 0, %s22
      %s32 = sphi 0, %s32
      %s34 = sphi 0, %s32
      %s35 = sphi 0, %s34
      %s49 = sphi 0, %s35
      %s53 = sphi 0, %s53
      %s55 = sphi 0, %s53
      %s56 = sphi 0, %s55
      %s70 = sphi 0, %s56
      %s78 = sphi 0, %s80
      %s81 = sphi 0, %s78
      %s82 = sphi 0, %s81
      %s98 = sphi 0, %s82
      %s106 = sphi 0, %s108
      %s109 = sphi 0, %s106
      %s110 = sphi 0, %s109
      %s126 = sphi 0, %s110
    $region4: #{tpu_custom_call.1} parent=1 // loop_header_branch
      %15 = sbr.rel (%p13) target = $region8
    $region5: #{tpu_custom_call.1} parent=1 // loop_body
      %s17 = ssub.s32 %s12, 1
      %s18 = ssub.s32 %s12, 2
      %s25 = sadd.s32 1, %s20
      %p26 = scmp.ge.s32.totalorder %s25, 1
      %s27 = scalar_select %p26, 0, %s25
      %s28 = sadd.s32 1, %s19
      %s29 = scalar_select %p26, %s28, %s19
      %p30 = scmp.ge.s32.totalorder %s29, 2
      %s31 = scalar_select %p30, 0, %s29
      %s33 = sadd.s32 %s32, 1
      %p36 = scmp.eq.s32.totalorder %s12, 1
      %p37 = scmp.ne.s32.totalorder %s32, %s34
      %p38 = scmp.eq.s32.totalorder %s12, 0
      %p39 = por %p37, %p38
      %p40 = scmp.ne.s32.totalorder %s32, %s34
      %p41 = scmp.eq.s32.totalorder %s17, 1
      %p42 = por %p40, %p41
      %p43 = scmp.ne.s32.totalorder %s34, %s35
      %p44 = scmp.eq.s32.totalorder %s17, 0
      %p45 = por %p43, %p44
      %p46 = scmp.ne.s32.totalorder %s34, %s35
      %p47 = scmp.eq.s32.totalorder %s18, 1
      %p48 = por %p46, %p47
      %p50 = scmp.ne.s32.totalorder %s35, %s49
      %p51 = scmp.eq.s32.totalorder %s18, 0
      %p52 = por %p50, %p51
      %s54 = sadd.s32 %s53, 1
      %p57 = scmp.eq.s32.totalorder %s12, 1
      %p58 = scmp.ne.s32.totalorder %s53, %s55
      %p59 = scmp.eq.s32.totalorder %s12, 0
      %p60 = por %p58, %p59
      %p61 = scmp.ne.s32.totalorder %s53, %s55
      %p62 = scmp.eq.s32.totalorder %s17, 1
      %p63 = por %p61, %p62
      %p64 = scmp.ne.s32.totalorder %s55, %s56
      %p65 = scmp.eq.s32.totalorder %s17, 0
      %p66 = por %p64, %p65
      %p67 = scmp.ne.s32.totalorder %s55, %s56
      %p68 = scmp.eq.s32.totalorder %s18, 1
      %p69 = por %p67, %p68
      %p71 = scmp.ne.s32.totalorder %s56, %s70
      %p72 = scmp.eq.s32.totalorder %s18, 0
      %p73 = por %p71, %p72
      %s74 = ssub.s32 %s19, %s31
      %s75 = ssub.s32 %s20, %s27
      %s76 = sor.u32 %s74, %s75
      %p77 = scmp.eq.s32.totalorder %s76, 0
      %s79 = sadd.s32 %s78, 1
      %s80 = scalar_select %p77, %s78, %s79
      %p83 = pneg %p77
      %p84 = scmp.eq.s32.totalorder %s12, 1
      %p85 = por %p83, %p84
      %p86 = scmp.ne.s32.totalorder %s78, %s81
      %p87 = scmp.eq.s32.totalorder %s12, 0
      %p88 = por %p86, %p87
      %p89 = scmp.ne.s32.totalorder %s78, %s81
      %p90 = scmp.eq.s32.totalorder %s17, 1
      %p91 = por %p89, %p90
      %p92 = scmp.ne.s32.totalorder %s81, %s82
      %p93 = scmp.eq.s32.totalorder %s17, 0
      %p94 = por %p92, %p93
      %p95 = scmp.ne.s32.totalorder %s81, %s82
      %p96 = scmp.eq.s32.totalorder %s18, 1
      %p97 = por %p95, %p96
      %p99 = scmp.ne.s32.totalorder %s82, %s98
      %p100 = scmp.eq.s32.totalorder %s18, 0
      %p101 = por %p99, %p100
      %s102 = ssub.s32 %s19, %s31
      %s103 = ssub.s32 %s20, %s27
      %s104 = sor.u32 %s102, %s103
      %p105 = scmp.eq.s32.totalorder %s104, 0
      %s107 = sadd.s32 %s106, 1
      %s108 = scalar_select %p105, %s106, %s107
      %p111 = pneg %p105
      %p112 = scmp.eq.s32.totalorder %s12, 1
      %p113 = por %p111, %p112
      %p114 = scmp.ne.s32.totalorder %s106, %s109
      %p115 = scmp.eq.s32.totalorder %s12, 0
      %p116 = por %p114, %p115
      %p117 = scmp.ne.s32.totalorder %s106, %s109
      %p118 = scmp.eq.s32.totalorder %s17, 1
      %p119 = por %p117, %p118
      %p120 = scmp.ne.s32.totalorder %s109, %s110
      %p121 = scmp.eq.s32.totalorder %s17, 0
      %p122 = por %p120, %p121
      %p123 = scmp.ne.s32.totalorder %s109, %s110
      %p124 = scmp.eq.s32.totalorder %s18, 1
      %p125 = por %p123, %p124
      %p127 = scmp.ne.s32.totalorder %s110, %s126
      %p128 = scmp.eq.s32.totalorder %s18, 0
      %p129 = por %p127, %p128
      %p130 = scmp.le.s32.totalorder 1, %s12
      %p131 = scmp.lt.s32.totalorder %s12, 3
      %p132 = pnand %p130, %p131
      %p133 = pneg %p132
      // Predicated region
      $region9: #{tpu_custom_call.1} parent=5 // pred_check
        _
      $region10: #{tpu_custom_call.1} parent=5 // pred_check_branch
        %135 = sbr.rel (%p132) target = $region12
      $region11: #{tpu_custom_call.1} parent=5 // pred_region
        %s136 = ssub.s32 %s12, 1
        // Predicated region
        $region13: #{tpu_custom_call.1} parent=11 // pred_check
          %p137 = pneg %p45
        $region14: #{tpu_custom_call.1} parent=11 // pred_check_branch
          %139 = sbr.rel (%p137) target = $region16
        $region15: #{tpu_custom_call.1} parent=11 // pred_region
          _
        $region16: #{tpu_custom_call.1} parent=11 // pred_fallthru
          _
        // Predicated region
        $region17: #{tpu_custom_call.1} parent=11 // pred_check
          %p140 = pneg %p66
        $region18: #{tpu_custom_call.1} parent=11 // pred_check_branch
          %142 = sbr.rel (%p140) target = $region20
        $region19: #{tpu_custom_call.1} parent=11 // pred_region
          _
        $region20: #{tpu_custom_call.1} parent=11 // pred_fallthru
          _
      $region12: #{tpu_custom_call.1} parent=5 // pred_fallthru
        _
      %p143 = scmp.lt.s32.totalorder %s12, 2
      // Predicated region
      $region21: #{tpu_custom_call.1} parent=5 // pred_check
        %p144 = pneg %p143
      $region22: #{tpu_custom_call.1} parent=5 // pred_check_branch
        %146 = sbr.rel (%p144) target = $region24
      $region23: #{tpu_custom_call.1} parent=5 // pred_region
        // Predicated region
        $region25: #{tpu_custom_call.1} parent=23 // pred_check
          %p147 = pneg %p88
        $region26: #{tpu_custom_call.1} parent=23 // pred_check_branch
          %149 = sbr.rel (%p147) target = $region28
        $region27: #{tpu_custom_call.1} parent=23 // pred_region
          %s150 = smul.u32 2, %s20
          %p151 = scmp.lt.s32.totalorder %s19, 1
          %s152 = scalar_select %p151, %s19, 1
          %p153 = scmp.lt.s32.totalorder %s150, 1
          %s154 = scalar_select %p153, %s150, 1
          %s155 = smul.addr %s152, 2
          %s156 = sadd.s32 %s154, %s155
          %s157 = smul.addr %s156, 4
          %s158 = scalar_lea.vmem %s2, %s157
          %s159 = smul.u32 2, %s20
        $region28: #{tpu_custom_call.1} parent=23 // pred_fallthru
          _
      $region24: #{tpu_custom_call.1} parent=5 // pred_fallthru
        _
      %p160 = scmp.le.s32.totalorder 1, %s12
      %p161 = scmp.lt.s32.totalorder %s12, 3
      %p162 = pnand %p160, %p161
      %p163 = pneg %p162
      // Predicated region
      $region29: #{tpu_custom_call.1} parent=5 // pred_check
        _
      $region30: #{tpu_custom_call.1} parent=5 // pred_check_branch
        %165 = sbr.rel (%p162) target = $region32
      $region31: #{tpu_custom_call.1} parent=5 // pred_region
        %s166 = ssub.s32 %s12, 1
        %p167 = pneg %p45
        %p168 = pneg %p42
        %p169 = pneg %p66
        %p170 = pneg %p63
        %s171 = smul.u32 2, %s22
        %p172 = scmp.lt.s32.totalorder %s21, 1
        %s173 = scalar_select %p172, %s21, 1
        %p174 = scmp.lt.s32.totalorder %s171, 1
        %s175 = scalar_select %p174, %s171, 1
        %s176 = smul.addr %s173, 2
        %s177 = sadd.s32 %s175, %s176
        %s178 = smul.addr %s177, 4
        %s179 = scalar_lea.vmem %s2, %s178
        %p180 = pneg %p94
        %p181 = pneg %p91
        %p182 = pneg %p122
        %p183 = pneg %p119
        %s184 = sand.u32 %s109, 1
        %s185 = scalar_lea.sflag [#allocation3], %s184
        %s186 = sand.u32 %s109, 1
        %s187 = smul.addr %s186, 64
        %s188 = scalar_lea.vmem [#allocation2], %s187
        %s189 = smul.u32 2, %s22
        %p190 = scmp.lt.s32.totalorder %s21, 1
        %s191 = scalar_select %p190, %s21, 1
        %p192 = scmp.lt.s32.totalorder %s189, 1
        %s193 = scalar_select %p192, %s189, 1
        %s194 = smul.addr %s191, 2
        %s195 = sadd.s32 %s193, %s194
        %s196 = smul.addr %s195, 4
        %s197 = scalar_lea.vmem %s2, %s196
        %s198 = smul.u32 2, %s22
        %s199 = smul.u32 2, %s22
        %v200 = vld [vmem:[%s0] sm:$0xff]
        %v201 = vld [vmem:[%s0 + $0x8] sm:$0xff]
        %v202 = vld [vmem:[%s0 + $0x10] sm:$0xff]
        %v203 = vld [vmem:[%s0 + $0x18] sm:$0xff]
        %v204 = vld [vmem:[%s197] sm:$0xff]
        %v205 = vld [vmem:[%s1] sm:$0xff]
        %v206 = vld [vmem:[%s1 + $0x8] sm:$0xff]
        %v207 = vld [vmem:[%s1 + $0x10] sm:$0xff]
        %v208 = vld [vmem:[%s1 + $0x18] sm:$0xff]
        %210 = vset.pattern.permute.xlu0 0
        %211 = vperm.xlu0 %210, %v205
        %v212 = vpop.permute.xlu0 %211
        %215 = vset.pattern.permute.xlu0 0
        %216 = vperm.xlu0 %215, %v206
        %v217 = vpop.permute.xlu0 %216
        %220 = vset.pattern.permute.xlu0 0
        %221 = vperm.xlu0 %220, %v207
        %v222 = vpop.permute.xlu0 %221
        %225 = vset.pattern.permute.xlu0 0
        %226 = vperm.xlu0 %225, %v208
        %v227 = vpop.permute.xlu0 %226
        %v230 = vcombine.high %v204, %v204
        %vm231 = vcmask 31744
        %v233 = vsel %vm231, %v200, 0
        %v236 = vsel %vm231, %v201, 0
        %v239 = vsel %vm231, %v202, 0
        %v242 = vsel %vm231, %v203, 0
        %vm244 = vcmask 1043456
        %v245 = vsel %vm244, %v204, 0
        %v247 = vsel %vm244, %v230, 0
        %249 = vmatprep.subr.mxu0 %v247
        %250 = vmatpush1.msra.mxu0 %v245
        %251 = vmatprep.subr.mxu0 0.0
        %252 = vmatpush1.msra.mxu0 0.0
        %253 = vmatprep.subr.mxu0 0.0
        %254 = vmatpush1.msra.mxu0 0.0
        %255 = vmatprep.subr.mxu0 0.0
        %256 = vmatpush1.msra.mxu0 0.0
        %257 = vmatprep.subr.mxu0 0.0
        %258 = vmatpush1.msra.mxu0 0.0
        %259 = vmatprep.subr.mxu0 0.0
        %260 = vmatpush1.msra.mxu0 0.0
        %261 = vmatprep.subr.mxu0 0.0
        %262 = vmatpush1.msra.mxu0 0.0
        %263 = vmatprep.subr.mxu0 0.0
        %264 = vmatpush1.msra.mxu0 0.0
        %265 = vmatprep.subr.mxu0 0.0
        %266 = vmatpush1.msra.mxu0 0.0
        %267 = vmatprep.subr.mxu0 0.0
        %268 = vmatpush1.msra.mxu0 0.0
        %269 = vmatprep.subr.mxu0 0.0
        %270 = vmatpush1.msra.mxu0 0.0
        %271 = vmatprep.subr.mxu0 0.0
        %272 = vmatpush1.msra.mxu0 0.0
        %273 = vmatprep.subr.mxu0 0.0
        %274 = vmatpush1.msra.mxu0 0.0
        %275 = vmatprep.subr.mxu0 0.0
        %276 = vmatpush1.msra.mxu0 0.0
        %277 = vmatprep.subr.mxu0 0.0
        %278 = vmatpush1.msra.mxu0 0.0
        %279 = vmatprep.subr.mxu0 0.0
        %280 = vmatpush1.msra.mxu0 0.0
        %281 = vmatprep.subr.mxu0 0.0
        %282 = vmatpush1.msra.mxu0 0.0
        %283 = vmatprep.subr.mxu0 0.0
        %284 = vmatpush1.msra.mxu0 0.0
        %285 = vmatprep.subr.mxu0 0.0
        %286 = vmatpush1.msra.mxu0 0.0
        %287 = vmatprep.subr.mxu0 0.0
        %288 = vmatpush1.msra.mxu0 0.0
        %289 = vmatprep.subr.mxu0 0.0
        %290 = vmatpush1.msra.mxu0 0.0
        %291 = vmatprep.subr.mxu0 0.0
        %292 = vmatpush1.msra.mxu0 0.0
        %293 = vmatprep.subr.mxu0 0.0
        %294 = vmatpush1.msra.mxu0 0.0
        %295 = vmatprep.subr.mxu0 0.0
        %296 = vmatpush1.msra.mxu0 0.0
        %297 = vmatprep.subr.mxu0 0.0
        %298 = vmatpush1.msra.mxu0 0.0
        %299 = vmatprep.subr.mxu0 0.0
        %300 = vmatpush1.msra.mxu0 0.0
        %301 = vmatprep.subr.mxu0 0.0
        %302 = vmatpush1.msra.mxu0 0.0
        %303 = vmatprep.subr.mxu0 0.0
        %304 = vmatpush1.msra.mxu0 0.0
        %305 = vmatprep.subr.mxu0 0.0
        %306 = vmatpush1.msra.mxu0 0.0
        %307 = vmatprep.subr.mxu0 0.0
        %308 = vmatpush1.msra.mxu0 0.0
        %309 = vmatprep.subr.mxu0 0.0
        %310 = vmatpush1.msra.mxu0 0.0
        %311 = vmatprep.subr.mxu0 0.0
        %312 = vmatpush1.msra.mxu0 0.0
        %313 = vmatprep.mubr.f32.mxu0 0.0
        %314 = vmatmul.mubr.f32.gmra.mrb[0].mxu0 %v233
        %v315 = vpop.f32.mrb[0].mxu0
        %v316 = vadd.f32 %v212, %v315
        %v317 = vpop.f32.mrb[0].mxu0
        %v318 = vadd.f32 %v212, %v317
        %319 = vmatprep.mubr.f32.mxu0 0.0
        %320 = vmatmul.mubr.f32.gmra.mrb[0].mxu0 %v236
        %v321 = vpop.f32.mrb[0].mxu0
        %v322 = vadd.f32 %v217, %v321
        %v323 = vpop.f32.mrb[0].mxu0
        %v324 = vadd.f32 %v217, %v323
        %325 = vmatprep.mubr.f32.mxu0 0.0
        %326 = vmatmul.mubr.f32.gmra.mrb[0].mxu0 %v239
        %v327 = vpop.f32.mrb[0].mxu0
        %v328 = vadd.f32 %v222, %v327
        %v329 = vpop.f32.mrb[0].mxu0
        %v330 = vadd.f32 %v222, %v329
        %331 = vmatprep.mubr.f32.mxu0 0.0
        %332 = vmatmul.mubr.f32.gmra.mrb[0].mxu0 %v242
        %v333 = vpop.f32.mrb[0].mxu0
        %v334 = vadd.f32 %v227, %v333
        %v335 = vpop.f32.mrb[0].mxu0
        %v336 = vadd.f32 %v227, %v335
        %337 = vdwg.mxu0
        %338 = vst [vmem:[%s188] sm:$0xff] %v316
        %339 = vst [vmem:[%s188 + $0x8] sm:$0xff] %v318
        %340 = vst [vmem:[%s188 + $0x10] sm:$0xff] %v322
        %341 = vst [vmem:[%s188 + $0x18] sm:$0xff] %v324
        %342 = vst [vmem:[%s188 + $0x20] sm:$0xff] %v328
        %343 = vst [vmem:[%s188 + $0x28] sm:$0xff] %v330
        %344 = vst [vmem:[%s188 + $0x30] sm:$0xff] %v334
        %345 = vst [vmem:[%s188 + $0x38] sm:$0xff] %v336
        %s346 = sand.u32 %s109, 1
        %s347 = scalar_lea.sflag [#allocation3], %s346
        %s348 = sand.u32 %s109, 1
        %s349 = smul.addr %s348, 64
        %s350 = scalar_lea.vmem [#allocation2], %s349
        // Predicated region
        $region33: #{tpu_custom_call.1} parent=31 // pred_check
          %p351 = pneg %p119
        $region34: #{tpu_custom_call.1} parent=31 // pred_check_branch
          %353 = sbr.rel (%p351) target = $region36
        $region35: #{tpu_custom_call.1} parent=31 // pred_region
          %s354 = smul.u32 2, %s22
          %s356 = ssub.s32 1024, 1024
          %357 = vsyncadd %s347, %s356
          %s358 = smul.addr %s21, 8
          %s359 = sadd.s32 %s354, %s358
          %s360 = smul.addr %s359, 128
          %s361 = scalar_lea.hbm %s3, %s360
          %s362 = sshll.u32 %s350, 4
          %s363 = int_to_ptr.vmem [resolvable:$true] %s362
          %368 = dma.vmem_to_hbm [thread:$0]  %s363, 1024, %s361, %s347, 256, 256, 16
        $region36: #{tpu_custom_call.1} parent=31 // pred_fallthru
          _
      $region32: #{tpu_custom_call.1} parent=5 // pred_fallthru
        _
      %p369 = scmp.le.s32.totalorder 2, %s12
      // Predicated region
      $region37: #{tpu_custom_call.1} parent=5 // pred_check
        %p370 = pneg %p369
      $region38: #{tpu_custom_call.1} parent=5 // pred_check_branch
        %372 = sbr.rel (%p370) target = $region40
      $region39: #{tpu_custom_call.1} parent=5 // pred_region
        %s373 = ssub.s32 %s12, 2
        // Predicated region
        $region41: #{tpu_custom_call.1} parent=39 // pred_check
          %p374 = pneg %p125
        $region42: #{tpu_custom_call.1} parent=39 // pred_check_branch
          %376 = sbr.rel (%p374) target = $region44
        $region43: #{tpu_custom_call.1} parent=39 // pred_region
          %s377 = sand.u32 %s110, 1
          %s378 = scalar_lea.sflag [#allocation3], %s377
          %s379 = sand.u32 %s110, 1
          %s380 = smul.addr %s379, 64
          %s381 = scalar_lea.vmem [#allocation2], %s380
          %382 = dma.done %s378, 1024
        $region44: #{tpu_custom_call.1} parent=39 // pred_fallthru
          _
      $region40: #{tpu_custom_call.1} parent=5 // pred_fallthru
        _
    $region6: #{tpu_custom_call.1} parent=1 // loop_footer
      %s16 = sadd.s32 1, %s12
    $region7: #{tpu_custom_call.1} parent=1 // loop_footer_branch
      %11 = sbr.rel target = $region3
    $region8: #{tpu_custom_call.1} parent=1 // loop_exit
      _
    %383 = vsyncpa [#allocation3], 1
    %s384 = scalar_lea.sflag [#allocation3], 1
    %385 = vsyncpa %s384, 1

</llo_original>
